<compile_context>
chip_gen: v6e
topology: v6e:2x2x1
jax: 0.10.0
libtpu: 0.0.40
codegen_flags: <defaults>
</compile_context>

<pallas_src>
import jax
import jax.numpy as jnp
from jax.experimental import pallas as pl
from jax.experimental.pallas import tpu as pltpu

# Module hyper-parameters (from bigram.py)
N_EMBED = 96
HIDDEN = 4 * N_EMBED          # 384
BLOCK_SIZE = 64               # sequence length used in the example
LANE = 128
SUBLANE = 8


def _round_up(x, m):
    return ((x + m - 1) // m) * m


def _ffn_kernel(x_ref, w1t_ref, b1_ref, w2t_ref, b2_ref, o_ref):
    """One row-tile per grid step.

    x_ref   : (tm, Cp)   VMEM  bf16  (Cp = 128, zero-padded channels)
    w1t_ref : (Cp, Hp)   VMEM  bf16  (W1 pre-transposed + padded; grid-invariant)
    b1_ref  : (1, Hp)    VMEM  f32
    w2t_ref : (Hp, Cp)   VMEM  bf16  (W2 pre-transposed + padded; grid-invariant)
    b2_ref  : (1, Cp)    VMEM  f32
    o_ref   : (tm, Cp)   VMEM  f32   (lane-dense 128-wide store)
    """
    # First matmul: bf16 operands, f32 accumulation on the MXU.
    h = jnp.dot(x_ref[...], w1t_ref[...], preferred_element_type=jnp.float32)
    # Bias + ReLU in f32 on the VPU.
    h = jnp.maximum(h + b1_ref[...], 0.0)
    # Second matmul: cast the activation back to bf16 for the MXU, keep f32 acc.
    y = jnp.dot(h.astype(w2t_ref.dtype), w2t_ref[...],
                preferred_element_type=jnp.float32)
    y = y + b2_ref[...]
    # Dropout: identity (eval mode).
    o_ref[...] = y.astype(o_ref.dtype)


def prepare_ffn_params(w1, b1, w2, b2, *, param_dtype=jnp.bfloat16):
    """One-off parameter prep (pad + transpose + cast), hoisted out of the hot path.

    PyTorch layout: w1 (4C, C), b1 (4C,), w2 (C, 4C), b2 (C,).
    """
    H, C = w1.shape
    Cp = _round_up(C, LANE)       # 96  -> 128
    Hp = _round_up(H, LANE)       # 384 -> 384
    w1t = jnp.pad(w1, ((0, Hp - H), (0, Cp - C))).T.astype(param_dtype)   # (Cp, Hp)
    w2t = jnp.pad(w2, ((0, Cp - C), (0, Hp - H))).T.astype(param_dtype)   # (Hp, Cp)
    b1p = jnp.pad(b1, (0, Hp - H)).reshape(1, Hp).astype(jnp.float32)     # (1, Hp)
    b2p = jnp.pad(b2, (0, Cp - C)).reshape(1, Cp).astype(jnp.float32)     # (1, Cp)
    return {"w1t": w1t, "b1": b1p, "w2t": w2t, "b2": b2p}


def feed_forward(x, params, *, block_rows=512):
    """x: (B, T, C); params: output of prepare_ffn_params()."""
    B, T, C = x.shape
    w1t, b1p, w2t, b2p = params["w1t"], params["b1"], params["w2t"], params["b2"]
    Cp, Hp = w1t.shape

    M = B * T
    # Row tile: as many rows as block_rows allows (sublane multiple of 8),
    # capped at the (padded) number of rows. No artificial 2-way split: on
    # single-TC v5e/v6e extra steps are pure overhead, and tiny per-core tiles
    # don't pay off on v7x either.
    tm = min(_round_up(block_rows, SUBLANE), _round_up(M, SUBLANE))
    Mp = _round_up(M, tm)

    # Per-call input prep: flatten rows, zero-pad channels to a full lane,
    # cast to the bf16 compute dtype (halves the HBM->VMEM bytes for x).
    x2 = jnp.pad(x.reshape(M, C), ((0, Mp - M), (0, Cp - C))).astype(w1t.dtype)

    grid = (Mp // tm,)

    # Explicit VMEM budget: double-buffered x/out tiles, single-buffered
    # resident weights/biases, plus the f32 h intermediate (with 2x headroom).
    wbytes = jnp.dtype(w1t.dtype).itemsize
    obytes = jnp.dtype(x.dtype).itemsize
    vmem_need = (
        2 * tm * Cp * wbytes          # x tiles (double-buffered, bf16)
        + 2 * tm * Cp * obytes        # out tiles (double-buffered)
        + 2 * Cp * Hp * wbytes        # W1.T + W2.T resident (Buffered(1))
        + (Hp + Cp) * 4               # biases (f32)
        + tm * Hp * 4                 # h intermediate (f32)
    )
    vmem_limit = int(min(64 * 1024 * 1024, max(2 * vmem_need, 16 * 1024 * 1024)))

    out = pl.pallas_call(
        _ffn_kernel,
        out_shape=jax.ShapeDtypeStruct((Mp, Cp), x.dtype),
        grid_spec=pltpu.PrefetchScalarGridSpec(
            num_scalar_prefetch=0,
            grid=grid,
            in_specs=[
                pl.BlockSpec((tm, Cp), lambda i: (i, 0)),          # x row-tile
                pl.BlockSpec((Cp, Hp), lambda i: (0, 0),
                             pipeline_mode=pl.Buffered(1)),        # W1.T resident
                pl.BlockSpec((1, Hp), lambda i: (0, 0),
                             pipeline_mode=pl.Buffered(1)),        # b1
                pl.BlockSpec((Hp, Cp), lambda i: (0, 0),
                             pipeline_mode=pl.Buffered(1)),        # W2.T resident
                pl.BlockSpec((1, Cp), lambda i: (0, 0),
                             pipeline_mode=pl.Buffered(1)),        # b2
            ],
            out_specs=pl.BlockSpec((tm, Cp), lambda i: (i, 0)),
        ),
        compiler_params=pltpu.CompilerParams(
            dimension_semantics=("parallel",),
            vmem_limit_bytes=vmem_limit,
        ),
    )(x2, w1t, b1p, w2t, b2p)

    # TODO(synk): when the consumer can accept the lane-padded (Mp, Cp) layout,
    # skip this slice/reshape (padded columns are exactly zero).
    return out[:M, :C].reshape(B, T, C)


def _reference(x, w1, b1, w2, b2):
    """Pure-JAX f32 reference mirroring the PyTorch forward (eval mode)."""
    h = jnp.maximum(x @ w1.T + b1, 0.0)
    return h @ w2.T + b2


if __name__ == "__main__":
    key = jax.random.PRNGKey(0)
    k_x, k_w1, k_b1, k_w2, k_b2 = jax.random.split(key, 5)

    B, T, C = 2, BLOCK_SIZE, N_EMBED

    x = jax.random.normal(k_x, (B, T, C), dtype=jnp.float32)
    # deterministic synthetic parameters, PyTorch (out_features, in_features) layout
    w1 = jax.random.normal(k_w1, (HIDDEN, C), dtype=jnp.float32) * 0.02
    b1 = jax.random.normal(k_b1, (HIDDEN,), dtype=jnp.float32) * 0.02
    w2 = jax.random.normal(k_w2, (C, HIDDEN), dtype=jnp.float32) * 0.02
    b2 = jax.random.normal(k_b2, (C,), dtype=jnp.float32) * 0.02

    # One-off parameter prep (parameter-load time, not per-forward).
    params = prepare_ffn_params(w1, b1, w2, b2)

    fwd = jax.jit(feed_forward)
    out = jax.block_until_ready(fwd(x, params))

    ref = _reference(x, w1, b1, w2, b2)
    assert out.shape == (B, T, C)
    # bf16 MXU operands (f32 accumulation) -> slightly looser tolerance vs f32 ref.
    assert jnp.allclose(out, ref, atol=2e-2, rtol=2e-2), "mismatch vs JAX reference"

    print("KERNEL_OK")
</pallas_src>

<mosaic_0001>
module attributes {stable_mosaic.version = 11 : i64} {
  func.func @_ffn_kernel(%arg0: i32, %arg1: memref<128x128xbf16, #tpu.memory_space<vmem>>, %arg2: memref<128x384xbf16, #tpu.memory_space<vmem>>, %arg3: memref<1x384xf32, #tpu.memory_space<vmem>>, %arg4: memref<384x128xbf16, #tpu.memory_space<vmem>>, %arg5: memref<1x128xf32, #tpu.memory_space<vmem>>, %arg6: memref<128x128xf32, #tpu.memory_space<vmem>>) attributes {dimension_semantics = [#tpu.dimension_semantics<parallel>], iteration_bounds = array<i64: 1>, scalar_prefetch = 0 : i64, scratch_operands = 0 : i64, tpu.core_type = #tpu.core_type<tc>, window_params = [{transform_indices = @transform_0, window_bounds = array<i64: 128, 128>}, {pipeline_mode = #tpu.pipeline_mode<synchronous>, transform_indices = @transform_1, window_bounds = array<i64: 128, 384>}, {pipeline_mode = #tpu.pipeline_mode<synchronous>, transform_indices = @transform_2, window_bounds = array<i64: 1, 384>}, {pipeline_mode = #tpu.pipeline_mode<synchronous>, transform_indices = @transform_3, window_bounds = array<i64: 384, 128>}, {pipeline_mode = #tpu.pipeline_mode<synchronous>, transform_indices = @transform_4, window_bounds = array<i64: 1, 128>}, {transform_indices = @transform_5, window_bounds = array<i64: 128, 128>}]} {
    %c0 = arith.constant 0 : index
    %c0_0 = arith.constant 0 : index
    %0 = vector.load %arg1[%c0, %c0_0] : memref<128x128xbf16, #tpu.memory_space<vmem>>, vector<128x128xbf16>
    %c0_1 = arith.constant 0 : index
    %c0_2 = arith.constant 0 : index
    %1 = vector.load %arg2[%c0_1, %c0_2] : memref<128x384xbf16, #tpu.memory_space<vmem>>, vector<128x384xbf16>
    %cst = arith.constant dense<0.000000e+00> : vector<128x384xf32>
    %2 = tpu.matmul %0, %1, %cst {dimension_numbers = #tpu.dot_dimension_numbers<[1], [0], [0], [1], [0, 0, 1, 1], [], []>} : vector<128x128xbf16>, vector<128x384xbf16>, vector<128x384xf32> -> vector<128x384xf32>
    %c0_3 = arith.constant 0 : index
    %c0_4 = arith.constant 0 : index
    %3 = vector.load %arg3[%c0_3, %c0_4] : memref<1x384xf32, #tpu.memory_space<vmem>>, vector<1x384xf32>
    %4 = vector.broadcast %3 : vector<1x384xf32> to vector<128x384xf32>
    %5 = arith.addf %2, %4 : vector<128x384xf32>
    %cst_5 = arith.constant 0.000000e+00 : f32
    %6 = vector.broadcast %cst_5 : f32 to vector<128x384xf32>
    %7 = arith.maximumf %5, %6 : vector<128x384xf32>
    %8 = arith.truncf %7 : vector<128x384xf32> to vector<128x384xbf16>
    %c0_6 = arith.constant 0 : index
    %c0_7 = arith.constant 0 : index
    %9 = vector.load %arg4[%c0_6, %c0_7] : memref<384x128xbf16, #tpu.memory_space<vmem>>, vector<384x128xbf16>
    %cst_8 = arith.constant dense<0.000000e+00> : vector<128x128xf32>
    %10 = tpu.matmul %8, %9, %cst_8 {dimension_numbers = #tpu.dot_dimension_numbers<[1], [0], [0], [1], [0, 0, 1, 1], [], []>} : vector<128x384xbf16>, vector<384x128xbf16>, vector<128x128xf32> -> vector<128x128xf32>
    %c0_9 = arith.constant 0 : index
    %c0_10 = arith.constant 0 : index
    %11 = vector.load %arg5[%c0_9, %c0_10] : memref<1x128xf32, #tpu.memory_space<vmem>>, vector<1x128xf32>
    %12 = vector.broadcast %11 : vector<1x128xf32> to vector<128x128xf32>
    %13 = arith.addf %10, %12 : vector<128x128xf32>
    %c0_11 = arith.constant 0 : index
    %c0_12 = arith.constant 0 : index
    %14 = vector.load %arg6[%c0_11, %c0_12] : memref<128x128xf32, #tpu.memory_space<vmem>>, vector<128x128xf32>
    tpu.vector_store %arg6[%c0_11, %c0_12], %13 {strides = array<i32>} : memref<128x128xf32, #tpu.memory_space<vmem>>, vector<128x128xf32>,
    return
  }
  func.func @transform_0(%arg0: i32) -> (i32, i32) {
    %c0_i32 = arith.constant 0 : i32
    %c0_i32_0 = arith.constant 0 : i32
    return %arg0, %c0_i32 : i32, i32
  }
  func.func @transform_1(%arg0: i32) -> (i32, i32) {
    %c0_i32 = arith.constant 0 : i32
    %c0_i32_0 = arith.constant 0 : i32
    %c0_i32_1 = arith.constant 0 : i32
    return %c0_i32, %c0_i32_0 : i32, i32
  }
  func.func @transform_2(%arg0: i32) -> (i32, i32) {
    %c0_i32 = arith.constant 0 : i32
    %c0_i32_0 = arith.constant 0 : i32
    %c0_i32_1 = arith.constant 0 : i32
    return %c0_i32, %c0_i32_0 : i32, i32
  }
  func.func @transform_3(%arg0: i32) -> (i32, i32) {
    %c0_i32 = arith.constant 0 : i32
    %c0_i32_0 = arith.constant 0 : i32
    %c0_i32_1 = arith.constant 0 : i32
    return %c0_i32, %c0_i32_0 : i32, i32
  }
  func.func @transform_4(%arg0: i32) -> (i32, i32) {
    %c0_i32 = arith.constant 0 : i32
    %c0_i32_0 = arith.constant 0 : i32
    %c0_i32_1 = arith.constant 0 : i32
    return %c0_i32, %c0_i32_0 : i32, i32
  }
  func.func @transform_5(%arg0: i32) -> (i32, i32) {
    %c0_i32 = arith.constant 0 : i32
    %c0_i32_0 = arith.constant 0 : i32
    return %arg0, %c0_i32 : i32, i32
  }
}

</mosaic_0001>

<llo_original>
// kernel: feed_forward.1
$region0: #{feed_forward.1}
  #allocation0 [shape = 'u32[]', space=smem, size = 0x4, offset = 0x4, fixed_abs, tag = 'smem constant byte address 0x4 - core index']
  #allocation1 [shape = 'u32[144,128]{1,0:T(1,128)}', space=vmem, size = 0x12000, scoped, tag = 'internal scratch']
  %s0 = inlined_call_operand.vmem [shape: bf16[128,128], index: 0, kind: input, shape index: {}]
  %s1 = inlined_call_operand.vmem [shape: bf16[128,384], index: 1, kind: input, shape index: {}]
  %s2 = inlined_call_operand.vmem [shape: f32[1,384], index: 2, kind: input, shape index: {}]
  %s3 = inlined_call_operand.hbm [shape: bf16[384,128], index: 3, kind: input, shape index: {}]
  %s4 = inlined_call_operand.vmem [shape: f32[1,128], index: 4, kind: input, shape index: {}]
  %s5 = inlined_call_operand.hbm [shape: f32[128,128], index: 5, kind: output, shape index: {}]
  %s6 = sld [smem:[#allocation0]]
  $region34: #{feed_forward.1} parent=0
    _
  %s8 = ssub.s32 1, %s6
  %s9 = scalar_select 0, %s8, %s6
  $region1: #{feed_forward.1} parent=0
    #allocation2 [shape = 'u8[98304]{0}', space=vmem, size = 0x18000, scoped, tag = 'input window, operand 3, single buffered']
    #allocation3 [shape = 's32[1]{0}', space=sflag, size = 0x4, scoped, tag = 'scoped memory for feed_forward.1']
    #allocation4 [shape = 's32[1]{0}', space=sflag, size = 0x4, scoped, tag = 'scoped memory for feed_forward.1']
    #allocation5 [shape = 'u8[65536]{0}', space=vmem, size = 0x10000, scoped, tag = 'output window, operand 0, single buffered']
    %10 = vsyncpa [#allocation3], 0
    %11 = vsyncpa [#allocation4], 0
    // Predicated region
    $region2: #{feed_forward.1} parent=1 // pred_check
      _
    $region3: #{feed_forward.1} parent=1 // pred_check_branch
      %13 = sbr.rel (0) target = $region5
    $region4: #{feed_forward.1} parent=1 // pred_region
      _
    $region5: #{feed_forward.1} parent=1 // pred_fallthru
      _
    // Predicated region
    $region6: #{feed_forward.1} parent=1 // pred_check
      _
    $region7: #{feed_forward.1} parent=1 // pred_check_branch
      %15 = sbr.rel (0) target = $region9
    $region8: #{feed_forward.1} parent=1 // pred_region
      _
    $region9: #{feed_forward.1} parent=1 // pred_fallthru
      _
    // Predicated region
    $region10: #{feed_forward.1} parent=1 // pred_check
      _
    $region11: #{feed_forward.1} parent=1 // pred_check_branch
      %17 = sbr.rel (0) target = $region13
    $region12: #{feed_forward.1} parent=1 // pred_region
      _
    $region13: #{feed_forward.1} parent=1 // pred_fallthru
      _
    // Predicated region
    $region14: #{feed_forward.1} parent=1 // pred_check
      _
    $region15: #{feed_forward.1} parent=1 // pred_check_branch
      %19 = sbr.rel (0) target = $region17
    $region16: #{feed_forward.1} parent=1 // pred_region
      %s21 = ssub.s32 3072, 3072
      %22 = vsyncadd [#allocation3], %s21
      %s23 = sshll.u32 [#allocation2], 4
      %s24 = int_to_ptr.vmem [resolvable:$true] %s23
      %29 = dma.hbm_to_vmem [thread:$0]  %s3, 3072, %s24, [#allocation3], 64, 64, 4
    $region17: #{feed_forward.1} parent=1 // pred_fallthru
      _
    // Predicated region
    $region18: #{feed_forward.1} parent=1 // pred_check
      _
    $region19: #{feed_forward.1} parent=1 // pred_check_branch
      %31 = sbr.rel (0) target = $region21
    $region20: #{feed_forward.1} parent=1 // pred_region
      _
    $region21: #{feed_forward.1} parent=1 // pred_fallthru
      _
    // Predicated region
    $region22: #{feed_forward.1} parent=1 // pred_check
      _
    $region23: #{feed_forward.1} parent=1 // pred_check_branch
      %33 = sbr.rel (0) target = $region25
    $region24: #{feed_forward.1} parent=1 // pred_region
      %34 = dma.done [#allocation3], 3072
    $region25: #{feed_forward.1} parent=1 // pred_fallthru
      _
    %v36 = vld [vmem:[%s0] sm:$0xf]
    %v37 = vld [vmem:[%s0 + $0x4] sm:$0xf]
    %v38 = vld [vmem:[%s0 + $0x8] sm:$0xf]
    %v39 = vld [vmem:[%s0 + $0xc] sm:$0xf]
    %v40 = vld [vmem:[%s0 + $0x10] sm:$0xf]
    %v41 = vld [vmem:[%s0 + $0x14] sm:$0xf]
    %v42 = vld [vmem:[%s0 + $0x18] sm:$0xf]
    %v43 = vld [vmem:[%s0 + $0x1c] sm:$0xf]
    %v44 = vld [vmem:[%s0 + $0x20] sm:$0xf]
    %v45 = vld [vmem:[%s0 + $0x24] sm:$0xf]
    %v46 = vld [vmem:[%s0 + $0x28] sm:$0xf]
    %v47 = vld [vmem:[%s0 + $0x2c] sm:$0xf]
    %v48 = vld [vmem:[%s0 + $0x30] sm:$0xf]
    %v49 = vld [vmem:[%s0 + $0x34] sm:$0xf]
    %v50 = vld [vmem:[%s0 + $0x38] sm:$0xf]
    %v51 = vld [vmem:[%s0 + $0x3c] sm:$0xf]
    %v52 = vld [vmem:[%s1] sm:$0xff]
    %v53 = vld [vmem:[%s1 + $0x8] sm:$0xf]
    %v54 = vld [vmem:[%s1 + $0xc] sm:$0xff]
    %v55 = vld [vmem:[%s1 + $0x14] sm:$0xf]
    %v56 = vld [vmem:[%s1 + $0x18] sm:$0xff]
    %v57 = vld [vmem:[%s1 + $0x20] sm:$0xf]
    %v58 = vld [vmem:[%s1 + $0x24] sm:$0xff]
    %v59 = vld [vmem:[%s1 + $0x2c] sm:$0xf]
    %v60 = vld [vmem:[%s1 + $0x30] sm:$0xff]
    %v61 = vld [vmem:[%s1 + $0x38] sm:$0xf]
    %v62 = vld [vmem:[%s1 + $0x3c] sm:$0xff]
    %v63 = vld [vmem:[%s1 + $0x44] sm:$0xf]
    %v64 = vld [vmem:[%s1 + $0x48] sm:$0xff]
    %v65 = vld [vmem:[%s1 + $0x50] sm:$0xf]
    %v66 = vld [vmem:[%s1 + $0x54] sm:$0xff]
    %v67 = vld [vmem:[%s1 + $0x5c] sm:$0xf]
    %v68 = vld [vmem:[%s1 + $0x60] sm:$0xff]
    %v69 = vld [vmem:[%s1 + $0x68] sm:$0xf]
    %v70 = vld [vmem:[%s1 + $0x6c] sm:$0xff]
    %v71 = vld [vmem:[%s1 + $0x74] sm:$0xf]
    %v72 = vld [vmem:[%s1 + $0x78] sm:$0xff]
    %v73 = vld [vmem:[%s1 + $0x80] sm:$0xf]
    %v74 = vld [vmem:[%s1 + $0x84] sm:$0xff]
    %v75 = vld [vmem:[%s1 + $0x8c] sm:$0xf]
    %v76 = vld [vmem:[%s1 + $0x90] sm:$0xff]
    %v77 = vld [vmem:[%s1 + $0x98] sm:$0xf]
    %v78 = vld [vmem:[%s1 + $0x9c] sm:$0xff]
    %v79 = vld [vmem:[%s1 + $0xa4] sm:$0xf]
    %v80 = vld [vmem:[%s1 + $0xa8] sm:$0xff]
    %v81 = vld [vmem:[%s1 + $0xb0] sm:$0xf]
    %v82 = vld [vmem:[%s1 + $0xb4] sm:$0xff]
    %v83 = vld [vmem:[%s1 + $0xbc] sm:$0xf]
    %v84 = vld [vmem:[%s2] sm:$0x7]
    %v86 = vlaneseq
    %v87 = vshrl.u32 %v86, 7
    %v88 = vsub.s32 0, %v87
    %v89 = vrot.slane %v84, %v88
    %v90 = vlaneseq
    %v91 = vshrl.u32 %v90, 7
    %v92 = vsub.s32 1, %v91
    %v93 = vrot.slane %v84, %v92
    %v94 = vlaneseq
    %v95 = vshrl.u32 %v94, 7
    %v96 = vsub.s32 2, %v95
    %v97 = vrot.slane %v84, %v96
    %v117 = vunpack.c.l.b16 %v36
    %v118 = vunpack.c.l.b16 %v37
    %v119 = vunpack.c.l.b16 %v38
    %v120 = vunpack.c.l.b16 %v39
    %v121 = vunpack.c.l.b16 %v40
    %v122 = vunpack.c.l.b16 %v41
    %v123 = vunpack.c.l.b16 %v42
    %v124 = vunpack.c.l.b16 %v43
    %v125 = vunpack.c.l.b16 %v44
    %v126 = vunpack.c.l.b16 %v45
    %v127 = vunpack.c.l.b16 %v46
    %v128 = vunpack.c.l.b16 %v47
    %v129 = vunpack.c.l.b16 %v48
    %v130 = vunpack.c.l.b16 %v49
    %v131 = vunpack.c.l.b16 %v50
    %v132 = vunpack.c.l.b16 %v51
    %v133 = vpack.c.b16 %v118, %v117
    %v134 = vpack.c.b16 %v120, %v119
    %v135 = vpack.c.b16 %v122, %v121
    %v136 = vpack.c.b16 %v124, %v123
    %v137 = vpack.c.b16 %v126, %v125
    %v138 = vpack.c.b16 %v128, %v127
    %v139 = vpack.c.b16 %v130, %v129
    %v140 = vpack.c.b16 %v132, %v131
    %v181 = vunpack.c.l.b16 %v52
    %v182 = vunpack.c.h.b16 %v52
    %v183 = vunpack.c.l.b16 %v53
    %v184 = vunpack.c.l.b16 %v54
    %v185 = vunpack.c.h.b16 %v54
    %v186 = vunpack.c.l.b16 %v55
    %v187 = vunpack.c.l.b16 %v56
    %v188 = vunpack.c.h.b16 %v56
    %v189 = vunpack.c.l.b16 %v57
    %v190 = vunpack.c.l.b16 %v58
    %v191 = vunpack.c.h.b16 %v58
    %v192 = vunpack.c.l.b16 %v59
    %v193 = vunpack.c.l.b16 %v60
    %v194 = vunpack.c.h.b16 %v60
    %v195 = vunpack.c.l.b16 %v61
    %v196 = vunpack.c.l.b16 %v62
    %v197 = vunpack.c.h.b16 %v62
    %v198 = vunpack.c.l.b16 %v63
    %v199 = vunpack.c.l.b16 %v64
    %v200 = vunpack.c.h.b16 %v64
    %v201 = vunpack.c.l.b16 %v65
    %v202 = vunpack.c.l.b16 %v66
    %v203 = vunpack.c.h.b16 %v66
    %v204 = vunpack.c.l.b16 %v67
    %v205 = vunpack.c.l.b16 %v68
    %v206 = vunpack.c.h.b16 %v68
    %v207 = vunpack.c.l.b16 %v69
    %v208 = vunpack.c.l.b16 %v70
    %v209 = vunpack.c.h.b16 %v70
    %v210 = vunpack.c.l.b16 %v71
    %v211 = vunpack.c.l.b16 %v72
    %v212 = vunpack.c.h.b16 %v72
    %v213 = vunpack.c.l.b16 %v73
    %v214 = vunpack.c.l.b16 %v74
    %v215 = vunpack.c.h.b16 %v74
    %v216 = vunpack.c.l.b16 %v75
    %v217 = vunpack.c.l.b16 %v76
    %v218 = vunpack.c.h.b16 %v76
    %v219 = vunpack.c.l.b16 %v77
    %v220 = vunpack.c.l.b16 %v78
    %v221 = vunpack.c.h.b16 %v78
    %v222 = vunpack.c.l.b16 %v79
    %v223 = vunpack.c.l.b16 %v80
    %v224 = vunpack.c.h.b16 %v80
    %v225 = vunpack.c.l.b16 %v81
    %v226 = vunpack.c.l.b16 %v82
    %v227 = vunpack.c.h.b16 %v82
    %v228 = vunpack.c.l.b16 %v83
    %v229 = vpack.c.b16 %v184, %v181
    %v230 = vpack.c.b16 %v185, %v182
    %v231 = vpack.c.b16 %v186, %v183
    %v232 = vpack.c.b16 %v190, %v187
    %v233 = vpack.c.b16 %v191, %v188
    %v234 = vpack.c.b16 %v192, %v189
    %v235 = vpack.c.b16 %v196, %v193
    %v236 = vpack.c.b16 %v197, %v194
    %v237 = vpack.c.b16 %v198, %v195
    %v238 = vpack.c.b16 %v202, %v199
    %v239 = vpack.c.b16 %v203, %v200
    %v240 = vpack.c.b16 %v204, %v201
    %v241 = vpack.c.b16 %v208, %v205
    %v242 = vpack.c.b16 %v209, %v206
    %v243 = vpack.c.b16 %v210, %v207
    %v244 = vpack.c.b16 %v214, %v211
    %v245 = vpack.c.b16 %v215, %v212
    %v246 = vpack.c.b16 %v216, %v213
    %v247 = vpack.c.b16 %v220, %v217
    %v248 = vpack.c.b16 %v221, %v218
    %v249 = vpack.c.b16 %v222, %v219
    %v250 = vpack.c.b16 %v226, %v223
    %v251 = vpack.c.b16 %v227, %v224
    %v252 = vpack.c.b16 %v228, %v225
    %277 = vmatprep.subr.bf16.mxu0 %v251
    %278 = vmatpush1.bf16.msra.mxu0 %v250
    %279 = vmatprep.subr.bf16.mxu0 %v248
    %280 = vmatpush1.bf16.msra.mxu0 %v247
    %281 = vmatprep.subr.bf16.mxu0 %v245
    %282 = vmatpush1.bf16.msra.mxu0 %v244
    %283 = vmatprep.subr.bf16.mxu0 %v242
    %284 = vmatpush1.bf16.msra.mxu0 %v241
    %285 = vmatprep.subr.bf16.mxu0 %v239
    %286 = vmatpush1.bf16.msra.mxu0 %v238
    %287 = vmatprep.subr.bf16.mxu0 %v236
    %288 = vmatpush1.bf16.msra.mxu0 %v235
    %289 = vmatprep.subr.bf16.mxu0 %v233
    %290 = vmatpush1.bf16.msra.mxu0 %v232
    %291 = vmatprep.subr.bf16.mxu0 %v230
    %292 = vmatpush1.bf16.msra.mxu0 %v229
    %293 = vmatprep.subr.bf16.mxu0 0
    %294 = vmatpush2.bf16.msra.mxu0 0
    %295 = vmatprep.subr.bf16.mxu0 0
    %296 = vmatpush2.bf16.msra.mxu0 0
    %297 = vmatprep.subr.bf16.mxu0 0
    %298 = vmatpush2.bf16.msra.mxu0 0
    %299 = vmatprep.subr.bf16.mxu0 0
    %300 = vmatpush2.bf16.msra.mxu0 0
    %301 = vmatprep.subr.bf16.mxu0 0
    %302 = vmatpush2.bf16.msra.mxu0 0
    %303 = vmatprep.subr.bf16.mxu0 0
    %304 = vmatpush2.bf16.msra.mxu0 0
    %305 = vmatprep.subr.bf16.mxu0 0
    %306 = vmatpush2.bf16.msra.mxu0 0
    %307 = vmatprep.subr.bf16.mxu0 0
    %308 = vmatpush2.bf16.msra.mxu0 0
    %309 = vmatprep.mubr.bf16.mxu0 0
    %310 = vmatmul.mubr.bf16.gmra.mxu0 %v133
    %v311 = vpop.f32.mrf.mxu0
    %v312 = vadd.f32 %v89, %v311
    %v313 = vpop.f32.mrf.mxu0
    %v314 = vadd.f32 %v93, %v313
    %v315 = vpop.f32.mrf.mxu0
    %v316 = vadd.f32 %v89, %v315
    %v317 = vpop.f32.mrf.mxu0
    %v318 = vadd.f32 %v93, %v317
    %319 = vmatprep.mubr.bf16.mxu0 0
    %320 = vmatmul.mubr.bf16.gmra.mxu0 %v134
    %v321 = vpop.f32.mrf.mxu0
    %v322 = vadd.f32 %v89, %v321
    %v323 = vpop.f32.mrf.mxu0
    %v324 = vadd.f32 %v93, %v323
    %v325 = vpop.f32.mrf.mxu0
    %v326 = vadd.f32 %v89, %v325
    %v327 = vpop.f32.mrf.mxu0
    %v328 = vadd.f32 %v93, %v327
    %329 = vmatprep.mubr.bf16.mxu0 0
    %330 = vmatmul.mubr.bf16.gmra.mxu0 %v135
    %v331 = vpop.f32.mrf.mxu0
    %v332 = vadd.f32 %v89, %v331
    %v333 = vpop.f32.mrf.mxu0
    %v334 = vadd.f32 %v93, %v333
    %v335 = vpop.f32.mrf.mxu0
    %v336 = vadd.f32 %v89, %v335
    %v337 = vpop.f32.mrf.mxu0
    %v338 = vadd.f32 %v93, %v337
    %339 = vmatprep.mubr.bf16.mxu0 0
    %340 = vmatmul.mubr.bf16.gmra.mxu0 %v136
    %v341 = vpop.f32.mrf.mxu0
    %v342 = vadd.f32 %v89, %v341
    %v343 = vpop.f32.mrf.mxu0
    %v344 = vadd.f32 %v93, %v343
    %v345 = vpop.f32.mrf.mxu0
    %v346 = vadd.f32 %v89, %v345
    %v347 = vpop.f32.mrf.mxu0
    %v348 = vadd.f32 %v93, %v347
    %349 = vmatprep.mubr.bf16.mxu0 0
    %350 = vmatmul.mubr.bf16.gmra.mxu0 %v137
    %v351 = vpop.f32.mrf.mxu0
    %v352 = vadd.f32 %v89, %v351
    %v353 = vpop.f32.mrf.mxu0
    %v354 = vadd.f32 %v93, %v353
    %v355 = vpop.f32.mrf.mxu0
    %v356 = vadd.f32 %v89, %v355
    %v357 = vpop.f32.mrf.mxu0
    %v358 = vadd.f32 %v93, %v357
    %359 = vmatprep.mubr.bf16.mxu0 0
    %360 = vmatmul.mubr.bf16.gmra.mxu0 %v138
    %v361 = vpop.f32.mrf.mxu0
    %v362 = vadd.f32 %v89, %v361
    %v363 = vpop.f32.mrf.mxu0
    %v364 = vadd.f32 %v93, %v363
    %v365 = vpop.f32.mrf.mxu0
    %v366 = vadd.f32 %v89, %v365
    %v367 = vpop.f32.mrf.mxu0
    %v368 = vadd.f32 %v93, %v367
    %369 = vmatprep.mubr.bf16.mxu0 0
    %370 = vmatmul.mubr.bf16.gmra.mxu0 %v139
    %v371 = vpop.f32.mrf.mxu0
    %v372 = vadd.f32 %v89, %v371
    %v373 = vpop.f32.mrf.mxu0
    %v374 = vadd.f32 %v93, %v373
    %v375 = vpop.f32.mrf.mxu0
    %v376 = vadd.f32 %v89, %v375
    %v377 = vpop.f32.mrf.mxu0
    %v378 = vadd.f32 %v93, %v377
    %379 = vmatprep.mubr.bf16.mxu0 0
    %380 = vmatmul.mubr.bf16.gmra.mxu0 %v140
    %v381 = vpop.f32.mrf.mxu0
    %v382 = vadd.f32 %v89, %v381
    %v383 = vpop.f32.mrf.mxu0
    %v384 = vadd.f32 %v93, %v383
    %v385 = vpop.f32.mrf.mxu0
    %v386 = vadd.f32 %v89, %v385
    %v387 = vpop.f32.mrf.mxu0
    %v388 = vadd.f32 %v93, %v387
    %389 = vdwg.mxu0
    %390 = vmatprep.subr.bf16.mxu0 0
    %391 = vmatpush1.bf16.msra.mxu0 %v252
    %392 = vmatprep.subr.bf16.mxu0 0
    %393 = vmatpush1.bf16.msra.mxu0 %v249
    %394 = vmatprep.subr.bf16.mxu0 0
    %395 = vmatpush1.bf16.msra.mxu0 %v246
    %396 = vmatprep.subr.bf16.mxu0 0
    %397 = vmatpush1.bf16.msra.mxu0 %v243
    %398 = vmatprep.subr.bf16.mxu0 0
    %399 = vmatpush1.bf16.msra.mxu0 %v240
    %400 = vmatprep.subr.bf16.mxu0 0
    %401 = vmatpush1.bf16.msra.mxu0 %v237
    %402 = vmatprep.subr.bf16.mxu0 0
    %403 = vmatpush1.bf16.msra.mxu0 %v234
    %404 = vmatprep.subr.bf16.mxu0 0
    %405 = vmatpush1.bf16.msra.mxu0 %v231
    %406 = vmatprep.subr.bf16.mxu0 0
    %407 = vmatpush2.bf16.msra.mxu0 0
    %408 = vmatprep.subr.bf16.mxu0 0
    %409 = vmatpush2.bf16.msra.mxu0 0
    %410 = vmatprep.subr.bf16.mxu0 0
    %411 = vmatpush2.bf16.msra.mxu0 0
    %412 = vmatprep.subr.bf16.mxu0 0
    %413 = vmatpush2.bf16.msra.mxu0 0
    %414 = vmatprep.subr.bf16.mxu0 0
    %415 = vmatpush2.bf16.msra.mxu0 0
    %416 = vmatprep.subr.bf16.mxu0 0
    %417 = vmatpush2.bf16.msra.mxu0 0
    %418 = vmatprep.subr.bf16.mxu0 0
    %419 = vmatpush2.bf16.msra.mxu0 0
    %420 = vmatprep.subr.bf16.mxu0 0
    %421 = vmatpush2.bf16.msra.mxu0 0
    %422 = vmatprep.mubr.bf16.mxu0 0
    %423 = vmatmul.mubr.bf16.gmra.mxu0 %v133
    %v424 = vpop.f32.mrf.mxu0
    %v425 = vadd.f32 %v97, %v424
    %v426 = vpop.f32.mrf.mxu0
    %v427 = vpop.f32.mrf.mxu0
    %v428 = vadd.f32 %v97, %v427
    %v429 = vpop.f32.mrf.mxu0
    %430 = vmatprep.mubr.bf16.mxu0 0
    %431 = vmatmul.mubr.bf16.gmra.mxu0 %v134
    %v432 = vpop.f32.mrf.mxu0
    %v433 = vadd.f32 %v97, %v432
    %v434 = vpop.f32.mrf.mxu0
    %v435 = vpop.f32.mrf.mxu0
    %v436 = vadd.f32 %v97, %v435
    %v437 = vpop.f32.mrf.mxu0
    %438 = vmatprep.mubr.bf16.mxu0 0
    %439 = vmatmul.mubr.bf16.gmra.mxu0 %v135
    %v440 = vpop.f32.mrf.mxu0
    %v441 = vadd.f32 %v97, %v440
    %v442 = vpop.f32.mrf.mxu0
    %v443 = vpop.f32.mrf.mxu0
    %v444 = vadd.f32 %v97, %v443
    %v445 = vpop.f32.mrf.mxu0
    %446 = vmatprep.mubr.bf16.mxu0 0
    %447 = vmatmul.mubr.bf16.gmra.mxu0 %v136
    %v448 = vpop.f32.mrf.mxu0
    %v449 = vadd.f32 %v97, %v448
    %v450 = vpop.f32.mrf.mxu0
    %v451 = vpop.f32.mrf.mxu0
    %v452 = vadd.f32 %v97, %v451
    %v453 = vpop.f32.mrf.mxu0
    %454 = vmatprep.mubr.bf16.mxu0 0
    %455 = vmatmul.mubr.bf16.gmra.mxu0 %v137
    %v456 = vpop.f32.mrf.mxu0
    %v457 = vadd.f32 %v97, %v456
    %v458 = vpop.f32.mrf.mxu0
    %v459 = vpop.f32.mrf.mxu0
    %v460 = vadd.f32 %v97, %v459
    %v461 = vpop.f32.mrf.mxu0
    %462 = vmatprep.mubr.bf16.mxu0 0
    %463 = vmatmul.mubr.bf16.gmra.mxu0 %v138
    %v464 = vpop.f32.mrf.mxu0
    %v465 = vadd.f32 %v97, %v464
    %v466 = vpop.f32.mrf.mxu0
    %v467 = vpop.f32.mrf.mxu0
    %v468 = vadd.f32 %v97, %v467
    %v469 = vpop.f32.mrf.mxu0
    %470 = vmatprep.mubr.bf16.mxu0 0
    %471 = vmatmul.mubr.bf16.gmra.mxu0 %v139
    %v472 = vpop.f32.mrf.mxu0
    %v473 = vadd.f32 %v97, %v472
    %v474 = vpop.f32.mrf.mxu0
    %v475 = vpop.f32.mrf.mxu0
    %v476 = vadd.f32 %v97, %v475
    %v477 = vpop.f32.mrf.mxu0
    %478 = vmatprep.mubr.bf16.mxu0 0
    %479 = vmatmul.mubr.bf16.gmra.mxu0 %v140
    %v480 = vpop.f32.mrf.mxu0
    %v481 = vadd.f32 %v97, %v480
    %v482 = vpop.f32.mrf.mxu0
    %v483 = vpop.f32.mrf.mxu0
    %v484 = vadd.f32 %v97, %v483
    %v485 = vpop.f32.mrf.mxu0
    %486 = vdwg.mxu0
    %v487 = vmax.f32 %v312, 0.0
    %v488 = vmax.f32 %v314, 0.0
    %v489 = vmax.f32 %v425, 0.0
    %v490 = vmax.f32 %v316, 0.0
    %v491 = vmax.f32 %v318, 0.0
    %v492 = vmax.f32 %v428, 0.0
    %v493 = vmax.f32 %v322, 0.0
    %v494 = vmax.f32 %v324, 0.0
    %v495 = vmax.f32 %v433, 0.0
    %v496 = vmax.f32 %v326, 0.0
    %v497 = vmax.f32 %v328, 0.0
    %v498 = vmax.f32 %v436, 0.0
    %v499 = vmax.f32 %v332, 0.0
    %v500 = vmax.f32 %v334, 0.0
    %v501 = vmax.f32 %v441, 0.0
    %v502 = vmax.f32 %v336, 0.0
    %v503 = vmax.f32 %v338, 0.0
    %v504 = vmax.f32 %v444, 0.0
    %v505 = vmax.f32 %v342, 0.0
    %v506 = vmax.f32 %v344, 0.0
    %v507 = vmax.f32 %v449, 0.0
    %v508 = vmax.f32 %v346, 0.0
    %v509 = vmax.f32 %v348, 0.0
    %v510 = vmax.f32 %v452, 0.0
    %v511 = vmax.f32 %v352, 0.0
    %v512 = vmax.f32 %v354, 0.0
    %v513 = vmax.f32 %v457, 0.0
    %v514 = vmax.f32 %v356, 0.0
    %v515 = vmax.f32 %v358, 0.0
    %v516 = vmax.f32 %v460, 0.0
    %v517 = vmax.f32 %v362, 0.0
    %v518 = vmax.f32 %v364, 0.0
    %v519 = vmax.f32 %v465, 0.0
    %v520 = vmax.f32 %v366, 0.0
    %v521 = vmax.f32 %v368, 0.0
    %v522 = vmax.f32 %v468, 0.0
    %v523 = vmax.f32 %v372, 0.0
    %v524 = vmax.f32 %v374, 0.0
    %v525 = vmax.f32 %v473, 0.0
    %v526 = vmax.f32 %v376, 0.0
    %v527 = vmax.f32 %v378, 0.0
    %v528 = vmax.f32 %v476, 0.0
    %v529 = vmax.f32 %v382, 0.0
    %v530 = vmax.f32 %v384, 0.0
    %v531 = vmax.f32 %v481, 0.0
    %v532 = vmax.f32 %v386, 0.0
    %v533 = vmax.f32 %v388, 0.0
    %v534 = vmax.f32 %v484, 0.0
    %v535 = vpack.c.bf16 %v490, %v487
    %v536 = vpack.c.bf16 %v491, %v488
    %v537 = vpack.c.bf16 %v492, %v489
    %v538 = vpack.c.bf16 %v496, %v493
    %v539 = vpack.c.bf16 %v497, %v494
    %v540 = vpack.c.bf16 %v498, %v495
    %v541 = vpack.c.bf16 %v502, %v499
    %v542 = vpack.c.bf16 %v503, %v500
    %v543 = vpack.c.bf16 %v504, %v501
    %v544 = vpack.c.bf16 %v508, %v505
    %v545 = vpack.c.bf16 %v509, %v506
    %v546 = vpack.c.bf16 %v510, %v507
    %v547 = vpack.c.bf16 %v514, %v511
    %v548 = vpack.c.bf16 %v515, %v512
    %v549 = vpack.c.bf16 %v516, %v513
    %v550 = vpack.c.bf16 %v520, %v517
    %v551 = vpack.c.bf16 %v521, %v518
    %v552 = vpack.c.bf16 %v522, %v519
    %v553 = vpack.c.bf16 %v526, %v523
    %v554 = vpack.c.bf16 %v527, %v524
    %v555 = vpack.c.bf16 %v528, %v525
    %v556 = vpack.c.bf16 %v532, %v529
    %v557 = vpack.c.bf16 %v533, %v530
    %v558 = vpack.c.bf16 %v534, %v531
    %v559 = vld [vmem:[#allocation2] sm:$0xf]
    %v560 = vld [vmem:[#allocation2 + $0x4] sm:$0xf]
    %v561 = vld [vmem:[#allocation2 + $0x8] sm:$0xf]
    %v562 = vld [vmem:[#allocation2 + $0xc] sm:$0xf]
    %v563 = vld [vmem:[#allocation2 + $0x10] sm:$0xf]
    %v564 = vld [vmem:[#allocation2 + $0x14] sm:$0xf]
    %v565 = vld [vmem:[#allocation2 + $0x18] sm:$0xf]
    %v566 = vld [vmem:[#allocation2 + $0x1c] sm:$0xf]
    %v567 = vld [vmem:[#allocation2 + $0x20] sm:$0xf]
    %v568 = vld [vmem:[#allocation2 + $0x24] sm:$0xf]
    %v569 = vld [vmem:[#allocation2 + $0x28] sm:$0xf]
    %v570 = vld [vmem:[#allocation2 + $0x2c] sm:$0xf]
    %v571 = vld [vmem:[#allocation2 + $0x30] sm:$0xf]
    %v572 = vld [vmem:[#allocation2 + $0x34] sm:$0xf]
    %v573 = vld [vmem:[#allocation2 + $0x38] sm:$0xf]
    %v574 = vld [vmem:[#allocation2 + $0x3c] sm:$0xf]
    %v575 = vld [vmem:[#allocation2 + $0x40] sm:$0xf]
    %v576 = vld [vmem:[#allocation2 + $0x44] sm:$0xf]
    %v577 = vld [vmem:[#allocation2 + $0x48] sm:$0xf]
    %v578 = vld [vmem:[#allocation2 + $0x4c] sm:$0xf]
    %v579 = vld [vmem:[#allocation2 + $0x50] sm:$0xf]
    %v580 = vld [vmem:[#allocation2 + $0x54] sm:$0xf]
    %v581 = vld [vmem:[#allocation2 + $0x58] sm:$0xf]
    %v582 = vld [vmem:[#allocation2 + $0x5c] sm:$0xf]
    %v583 = vld [vmem:[#allocation2 + $0x60] sm:$0xf]
    %v584 = vld [vmem:[#allocation2 + $0x64] sm:$0xf]
    %v585 = vld [vmem:[#allocation2 + $0x68] sm:$0xf]
    %v586 = vld [vmem:[#allocation2 + $0x6c] sm:$0xf]
    %v587 = vld [vmem:[#allocation2 + $0x70] sm:$0xf]
    %v588 = vld [vmem:[#allocation2 + $0x74] sm:$0xf]
    %v589 = vld [vmem:[#allocation2 + $0x78] sm:$0xf]
    %v590 = vld [vmem:[#allocation2 + $0x7c] sm:$0xf]
    %v591 = vld [vmem:[#allocation2 + $0x80] sm:$0xf]
    %v592 = vld [vmem:[#allocation2 + $0x84] sm:$0xf]
    %v593 = vld [vmem:[#allocation2 + $0x88] sm:$0xf]
    %v594 = vld [vmem:[#allocation2 + $0x8c] sm:$0xf]
    %v595 = vld [vmem:[#allocation2 + $0x90] sm:$0xf]
    %v596 = vld [vmem:[#allocation2 + $0x94] sm:$0xf]
    %v597 = vld [vmem:[#allocation2 + $0x98] sm:$0xf]
    %v598 = vld [vmem:[#allocation2 + $0x9c] sm:$0xf]
    %v599 = vld [vmem:[#allocation2 + $0xa0] sm:$0xf]
    %v600 = vld [vmem:[#allocation2 + $0xa4] sm:$0xf]
    %v601 = vld [vmem:[#allocation2 + $0xa8] sm:$0xf]
    %v602 = vld [vmem:[#allocation2 + $0xac] sm:$0xf]
    %v603 = vld [vmem:[#allocation2 + $0xb0] sm:$0xf]
    %v604 = vld [vmem:[#allocation2 + $0xb4] sm:$0xf]
    %v605 = vld [vmem:[#allocation2 + $0xb8] sm:$0xf]
    %v606 = vld [vmem:[#allocation2 + $0xbc] sm:$0xf]
    %v607 = vld [vmem:[%s4] sm:$0x1]
    %v609 = vlaneseq
    %v610 = vshrl.u32 %v609, 7
    %v611 = vsub.s32 0, %v610
    %v612 = vrot.slane %v607, %v611
    %v662 = vunpack.c.l.b16 %v559
    %v663 = vunpack.c.l.b16 %v560
    %v664 = vunpack.c.l.b16 %v561
    %v665 = vunpack.c.l.b16 %v562
    %v666 = vunpack.c.l.b16 %v563
    %v667 = vunpack.c.l.b16 %v564
    %v668 = vunpack.c.l.b16 %v565
    %v669 = vunpack.c.l.b16 %v566
    %v670 = vunpack.c.l.b16 %v567
    %v671 = vunpack.c.l.b16 %v568
    %v672 = vunpack.c.l.b16 %v569
    %v673 = vunpack.c.l.b16 %v570
    %v674 = vunpack.c.l.b16 %v571
    %v675 = vunpack.c.l.b16 %v572
    %v676 = vunpack.c.l.b16 %v573
    %v677 = vunpack.c.l.b16 %v574
    %v678 = vunpack.c.l.b16 %v575
    %v679 = vunpack.c.l.b16 %v576
    %v680 = vunpack.c.l.b16 %v577
    %v681 = vunpack.c.l.b16 %v578
    %v682 = vunpack.c.l.b16 %v579
    %v683 = vunpack.c.l.b16 %v580
    %v684 = vunpack.c.l.b16 %v581
    %v685 = vunpack.c.l.b16 %v582
    %v686 = vunpack.c.l.b16 %v583
    %v687 = vunpack.c.l.b16 %v584
    %v688 = vunpack.c.l.b16 %v585
    %v689 = vunpack.c.l.b16 %v586
    %v690 = vunpack.c.l.b16 %v587
    %v691 = vunpack.c.l.b16 %v588
    %v692 = vunpack.c.l.b16 %v589
    %v693 = vunpack.c.l.b16 %v590
    %v694 = vunpack.c.l.b16 %v591
    %v695 = vunpack.c.l.b16 %v592
    %v696 = vunpack.c.l.b16 %v593
    %v697 = vunpack.c.l.b16 %v594
    %v698 = vunpack.c.l.b16 %v595
    %v699 = vunpack.c.l.b16 %v596
    %v700 = vunpack.c.l.b16 %v597
    %v701 = vunpack.c.l.b16 %v598
    %v702 = vunpack.c.l.b16 %v599
    %v703 = vunpack.c.l.b16 %v600
    %v704 = vunpack.c.l.b16 %v601
    %v705 = vunpack.c.l.b16 %v602
    %v706 = vunpack.c.l.b16 %v603
    %v707 = vunpack.c.l.b16 %v604
    %v708 = vunpack.c.l.b16 %v605
    %v709 = vunpack.c.l.b16 %v606
    %v710 = vpack.c.b16 %v663, %v662
    %v711 = vpack.c.b16 %v665, %v664
    %v712 = vpack.c.b16 %v667, %v666
    %v713 = vpack.c.b16 %v669, %v668
    %v714 = vpack.c.b16 %v671, %v670
    %v715 = vpack.c.b16 %v673, %v672
    %v716 = vpack.c.b16 %v675, %v674
    %v717 = vpack.c.b16 %v677, %v676
    %v718 = vpack.c.b16 %v679, %v678
    %v719 = vpack.c.b16 %v681, %v680
    %v720 = vpack.c.b16 %v683, %v682
    %v721 = vpack.c.b16 %v685, %v684
    %v722 = vpack.c.b16 %v687, %v686
    %v723 = vpack.c.b16 %v689, %v688
    %v724 = vpack.c.b16 %v691, %v690
    %v725 = vpack.c.b16 %v693, %v692
    %v726 = vpack.c.b16 %v695, %v694
    %v727 = vpack.c.b16 %v697, %v696
    %v728 = vpack.c.b16 %v699, %v698
    %v729 = vpack.c.b16 %v701, %v700
    %v730 = vpack.c.b16 %v703, %v702
    %v731 = vpack.c.b16 %v705, %v704
    %v732 = vpack.c.b16 %v707, %v706
    %v733 = vpack.c.b16 %v709, %v708
    %758 = vmatprep.subr.bf16.mxu0 0
    %759 = vmatpush1.bf16.msra.mxu0 %v717
    %760 = vmatprep.subr.bf16.mxu0 0
    %761 = vmatpush1.bf16.msra.mxu0 %v716
    %762 = vmatprep.subr.bf16.mxu0 0
    %763 = vmatpush1.bf16.msra.mxu0 %v715
    %764 = vmatprep.subr.bf16.mxu0 0
    %765 = vmatpush1.bf16.msra.mxu0 %v714
    %766 = vmatprep.subr.bf16.mxu0 0
    %767 = vmatpush1.bf16.msra.mxu0 %v713
    %768 = vmatprep.subr.bf16.mxu0 0
    %769 = vmatpush1.bf16.msra.mxu0 %v712
    %770 = vmatprep.subr.bf16.mxu0 0
    %771 = vmatpush1.bf16.msra.mxu0 %v711
    %772 = vmatprep.subr.bf16.mxu0 0
    %773 = vmatpush1.bf16.msra.mxu0 %v710
    %774 = vmatprep.subr.bf16.mxu0 0
    %775 = vmatpush2.bf16.msra.mxu0 %v725
    %776 = vmatprep.subr.bf16.mxu0 0
    %777 = vmatpush2.bf16.msra.mxu0 %v724
    %778 = vmatprep.subr.bf16.mxu0 0
    %779 = vmatpush2.bf16.msra.mxu0 %v723
    %780 = vmatprep.subr.bf16.mxu0 0
    %781 = vmatpush2.bf16.msra.mxu0 %v722
    %782 = vmatprep.subr.bf16.mxu0 0
    %783 = vmatpush2.bf16.msra.mxu0 %v721
    %784 = vmatprep.subr.bf16.mxu0 0
    %785 = vmatpush2.bf16.msra.mxu0 %v720
    %786 = vmatprep.subr.bf16.mxu0 0
    %787 = vmatpush2.bf16.msra.mxu0 %v719
    %788 = vmatprep.subr.bf16.mxu0 0
    %789 = vmatpush2.bf16.msra.mxu0 %v718
    %790 = vmatprep.mubr.bf16.mxu0 %v536
    %791 = vmatmul.mubr.bf16.gmra.mxu0 %v535
    %v792 = vpop.f32.mrf.mxu0
    %v793 = vadd.f32 %v612, %v792
    %v794 = vpop.f32.mrf.mxu0
    %v795 = vpop.f32.mrf.mxu0
    %v796 = vadd.f32 %v612, %v795
    %v797 = vpop.f32.mrf.mxu0
    %798 = vmatprep.mubr.bf16.mxu0 %v539
    %799 = vmatmul.mubr.bf16.gmra.mxu0 %v538
    %v800 = vpop.f32.mrf.mxu0
    %v801 = vadd.f32 %v612, %v800
    %v802 = vpop.f32.mrf.mxu0
    %v803 = vpop.f32.mrf.mxu0
    %v804 = vadd.f32 %v612, %v803
    %v805 = vpop.f32.mrf.mxu0
    %806 = vmatprep.mubr.bf16.mxu0 %v542
    %807 = vmatmul.mubr.bf16.gmra.mxu0 %v541
    %v808 = vpop.f32.mrf.mxu0
    %v809 = vadd.f32 %v612, %v808
    %v810 = vpop.f32.mrf.mxu0
    %v811 = vpop.f32.mrf.mxu0
    %v812 = vadd.f32 %v612, %v811
    %v813 = vpop.f32.mrf.mxu0
    %814 = vmatprep.mubr.bf16.mxu0 %v545
    %815 = vmatmul.mubr.bf16.gmra.mxu0 %v544
    %v816 = vpop.f32.mrf.mxu0
    %v817 = vadd.f32 %v612, %v816
    %v818 = vpop.f32.mrf.mxu0
    %v819 = vpop.f32.mrf.mxu0
    %v820 = vadd.f32 %v612, %v819
    %v821 = vpop.f32.mrf.mxu0
    %822 = vmatprep.mubr.bf16.mxu0 %v548
    %823 = vmatmul.mubr.bf16.gmra.mxu0 %v547
    %v824 = vpop.f32.mrf.mxu0
    %v825 = vadd.f32 %v612, %v824
    %v826 = vpop.f32.mrf.mxu0
    %v827 = vpop.f32.mrf.mxu0
    %v828 = vadd.f32 %v612, %v827
    %v829 = vpop.f32.mrf.mxu0
    %830 = vmatprep.mubr.bf16.mxu0 %v551
    %831 = vmatmul.mubr.bf16.gmra.mxu0 %v550
    %v832 = vpop.f32.mrf.mxu0
    %v833 = vadd.f32 %v612, %v832
    %v834 = vpop.f32.mrf.mxu0
    %v835 = vpop.f32.mrf.mxu0
    %v836 = vadd.f32 %v612, %v835
    %v837 = vpop.f32.mrf.mxu0
    %838 = vmatprep.mubr.bf16.mxu0 %v554
    %839 = vmatmul.mubr.bf16.gmra.mxu0 %v553
    %v840 = vpop.f32.mrf.mxu0
    %v841 = vadd.f32 %v612, %v840
    %v842 = vpop.f32.mrf.mxu0
    %v843 = vpop.f32.mrf.mxu0
    %v844 = vadd.f32 %v612, %v843
    %v845 = vpop.f32.mrf.mxu0
    %846 = vmatprep.mubr.bf16.mxu0 %v557
    %847 = vmatmul.mubr.bf16.gmra.mxu0 %v556
    %v848 = vpop.f32.mrf.mxu0
    %v849 = vadd.f32 %v612, %v848
    %v850 = vpop.f32.mrf.mxu0
    %v851 = vpop.f32.mrf.mxu0
    %v852 = vadd.f32 %v612, %v851
    %v853 = vpop.f32.mrf.mxu0
    %854 = vdwg.mxu0
    %855 = vmatprep.subr.bf16.mxu0 0
    %856 = vmatpush1.bf16.msra.mxu0 %v733
    %857 = vmatprep.subr.bf16.mxu0 0
    %858 = vmatpush1.bf16.msra.mxu0 %v732
    %859 = vmatprep.subr.bf16.mxu0 0
    %860 = vmatpush1.bf16.msra.mxu0 %v731
    %861 = vmatprep.subr.bf16.mxu0 0
    %862 = vmatpush1.bf16.msra.mxu0 %v730
    %863 = vmatprep.subr.bf16.mxu0 0
    %864 = vmatpush1.bf16.msra.mxu0 %v729
    %865 = vmatprep.subr.bf16.mxu0 0
    %866 = vmatpush1.bf16.msra.mxu0 %v728
    %867 = vmatprep.subr.bf16.mxu0 0
    %868 = vmatpush1.bf16.msra.mxu0 %v727
    %869 = vmatprep.subr.bf16.mxu0 0
    %870 = vmatpush1.bf16.msra.mxu0 %v726
    %871 = vmatprep.subr.bf16.mxu0 0
    %872 = vmatpush2.bf16.msra.mxu0 0
    %873 = vmatprep.subr.bf16.mxu0 0
    %874 = vmatpush2.bf16.msra.mxu0 0
    %875 = vmatprep.subr.bf16.mxu0 0
    %876 = vmatpush2.bf16.msra.mxu0 0
    %877 = vmatprep.subr.bf16.mxu0 0
    %878 = vmatpush2.bf16.msra.mxu0 0
    %879 = vmatprep.subr.bf16.mxu0 0
    %880 = vmatpush2.bf16.msra.mxu0 0
    %881 = vmatprep.subr.bf16.mxu0 0
    %882 = vmatpush2.bf16.msra.mxu0 0
    %883 = vmatprep.subr.bf16.mxu0 0
    %884 = vmatpush2.bf16.msra.mxu0 0
    %885 = vmatprep.subr.bf16.mxu0 0
    %886 = vmatpush2.bf16.msra.mxu0 0
    %887 = vmatprep.mubr.bf16.mxu0 0
    %888 = vmatmul.mubr.bf16.gmra.mxu0 %v537
    %v889 = vpop.f32.mrf.mxu0
    %v890 = vadd.f32 %v793, %v889
    %v891 = vpop.f32.mrf.mxu0
    %v892 = vpop.f32.mrf.mxu0
    %v893 = vadd.f32 %v796, %v892
    %v894 = vpop.f32.mrf.mxu0
    %895 = vmatprep.mubr.bf16.mxu0 0
    %896 = vmatmul.mubr.bf16.gmra.mxu0 %v540
    %v897 = vpop.f32.mrf.mxu0
    %v898 = vadd.f32 %v801, %v897
    %v899 = vpop.f32.mrf.mxu0
    %v900 = vpop.f32.mrf.mxu0
    %v901 = vadd.f32 %v804, %v900
    %v902 = vpop.f32.mrf.mxu0
    %903 = vmatprep.mubr.bf16.mxu0 0
    %904 = vmatmul.mubr.bf16.gmra.mxu0 %v543
    %v905 = vpop.f32.mrf.mxu0
    %v906 = vadd.f32 %v809, %v905
    %v907 = vpop.f32.mrf.mxu0
    %v908 = vpop.f32.mrf.mxu0
    %v909 = vadd.f32 %v812, %v908
    %v910 = vpop.f32.mrf.mxu0
    %911 = vmatprep.mubr.bf16.mxu0 0
    %912 = vmatmul.mubr.bf16.gmra.mxu0 %v546
    %v913 = vpop.f32.mrf.mxu0
    %v914 = vadd.f32 %v817, %v913
    %v915 = vpop.f32.mrf.mxu0
    %v916 = vpop.f32.mrf.mxu0
    %v917 = vadd.f32 %v820, %v916
    %v918 = vpop.f32.mrf.mxu0
    %919 = vmatprep.mubr.bf16.mxu0 0
    %920 = vmatmul.mubr.bf16.gmra.mxu0 %v549
    %v921 = vpop.f32.mrf.mxu0
    %v922 = vadd.f32 %v825, %v921
    %v923 = vpop.f32.mrf.mxu0
    %v924 = vpop.f32.mrf.mxu0
    %v925 = vadd.f32 %v828, %v924
    %v926 = vpop.f32.mrf.mxu0
    %927 = vmatprep.mubr.bf16.mxu0 0
    %928 = vmatmul.mubr.bf16.gmra.mxu0 %v552
    %v929 = vpop.f32.mrf.mxu0
    %v930 = vadd.f32 %v833, %v929
    %v931 = vpop.f32.mrf.mxu0
    %v932 = vpop.f32.mrf.mxu0
    %v933 = vadd.f32 %v836, %v932
    %v934 = vpop.f32.mrf.mxu0
    %935 = vmatprep.mubr.bf16.mxu0 0
    %936 = vmatmul.mubr.bf16.gmra.mxu0 %v555
    %v937 = vpop.f32.mrf.mxu0
    %v938 = vadd.f32 %v841, %v937
    %v939 = vpop.f32.mrf.mxu0
    %v940 = vpop.f32.mrf.mxu0
    %v941 = vadd.f32 %v844, %v940
    %v942 = vpop.f32.mrf.mxu0
    %943 = vmatprep.mubr.bf16.mxu0 0
    %944 = vmatmul.mubr.bf16.gmra.mxu0 %v558
    %v945 = vpop.f32.mrf.mxu0
    %v946 = vadd.f32 %v849, %v945
    %v947 = vpop.f32.mrf.mxu0
    %v948 = vpop.f32.mrf.mxu0
    %v949 = vadd.f32 %v852, %v948
    %v950 = vpop.f32.mrf.mxu0
    %951 = vdwg.mxu0
    %952 = vst [vmem:[#allocation5] sm:$0xff] %v890
    %953 = vst [vmem:[#allocation5 + $0x8] sm:$0xff] %v893
    %954 = vst [vmem:[#allocation5 + $0x10] sm:$0xff] %v898
    %955 = vst [vmem:[#allocation5 + $0x18] sm:$0xff] %v901
    %956 = vst [vmem:[#allocation5 + $0x20] sm:$0xff] %v906
    %957 = vst [vmem:[#allocation5 + $0x28] sm:$0xff] %v909
    %958 = vst [vmem:[#allocation5 + $0x30] sm:$0xff] %v914
    %959 = vst [vmem:[#allocation5 + $0x38] sm:$0xff] %v917
    %960 = vst [vmem:[#allocation5 + $0x40] sm:$0xff] %v922
    %961 = vst [vmem:[#allocation5 + $0x48] sm:$0xff] %v925
    %962 = vst [vmem:[#allocation5 + $0x50] sm:$0xff] %v930
    %963 = vst [vmem:[#allocation5 + $0x58] sm:$0xff] %v933
    %964 = vst [vmem:[#allocation5 + $0x60] sm:$0xff] %v938
    %965 = vst [vmem:[#allocation5 + $0x68] sm:$0xff] %v941
    %966 = vst [vmem:[#allocation5 + $0x70] sm:$0xff] %v946
    %967 = vst [vmem:[#allocation5 + $0x78] sm:$0xff] %v949
    // Predicated region
    $region26: #{feed_forward.1} parent=1 // pred_check
      _
    $region27: #{feed_forward.1} parent=1 // pred_check_branch
      %969 = sbr.rel (0) target = $region29
    $region28: #{feed_forward.1} parent=1 // pred_region
      %s971 = ssub.s32 2048, 2048
      %972 = vsyncadd [#allocation4], %s971
      %s973 = sshll.u32 [#allocation5], 4
      %s974 = int_to_ptr.vmem [resolvable:$true] %s973
      %979 = dma.vmem_to_hbm [thread:$0]  %s974, 2048, %s5, [#allocation4], 128, 128, 8
    $region29: #{feed_forward.1} parent=1 // pred_fallthru
      _
    // Predicated region
    $region30: #{feed_forward.1} parent=1 // pred_check
      _
    $region31: #{feed_forward.1} parent=1 // pred_check_branch
      %981 = sbr.rel (0) target = $region33
    $region32: #{feed_forward.1} parent=1 // pred_region
      %982 = dma.done [#allocation4], 2048
    $region33: #{feed_forward.1} parent=1 // pred_fallthru
      _
    %983 = vsyncpa [#allocation3], 1
    %984 = vsyncpa [#allocation4], 1

</llo_original>
